<compile_context>
chip_gen: v7x
topology: tpu7x:2x2x1
jax: 0.10.0
libtpu: 0.0.40
codegen_flags: <defaults>
</compile_context>

<pallas_src>
import functools

import jax
import jax.numpy as jnp
from jax.experimental import pallas as pl
from jax.experimental.pallas import tpu as pltpu

_LANE = 128
_SUBLANE = 8
_INT32_MAX = jnp.iinfo(jnp.int32).max


def _round_up(x, m):
    return ((x + m - 1) // m) * m


# ----------------------------------------------------------------------------
# Pallas kernel: tiled running argmax over the vocab (last) axis.
# ----------------------------------------------------------------------------
def _argmax_kernel(em_ref, out_ref, max_sc, idx_sc, *, vocab, tsr):
    v = pl.program_id(1)
    tr, tv = em_ref.shape
    n_chunks = tv // _LANE
    n_sub = tr // tsr

    # Static (trace-time) geometry of the last vocab tile.
    n_voc_tiles = (vocab + tv - 1) // tv
    last = n_voc_tiles - 1
    v_tail = vocab - last * tv               # valid columns in the last tile
    tail_full = v_tail // _LANE              # fully valid 128-lane chunks
    tail_rem = v_tail % _LANE                # lanes in the partial tail chunk

    @pl.when(v == 0)
    def _init():
        max_sc[...] = jnp.full(max_sc.shape, -jnp.inf, jnp.float32)
        idx_sc[...] = jnp.zeros(idx_sc.shape, jnp.int32)

    lane = jax.lax.broadcasted_iota(jnp.int32, (tsr, _LANE), 1)   # hoisted

    def tile_pass(chunk_base, n_full, rem_lanes):
        """One vocab tile: sub-block accumulators stay in vregs; one scratch
        load + store per sub-block per vocab step."""
        n_total = n_full + (1 if rem_lanes else 0)

        def sub_body(s, carry):
            r0 = pl.multiple_of(s * tsr, tsr)
            run_max = max_sc[pl.ds(r0, tsr), :]       # (tsr,128) f32
            run_idx = idx_sc[pl.ds(r0, tsr), :]       # (tsr,128) i32 chunk ids
            for j in range(n_total):                  # static, unrolled, VPU-only
                chunk = em_ref[pl.ds(r0, tsr),
                               j * _LANE:(j + 1) * _LANE].astype(jnp.float32)
                if rem_lanes and j == n_total - 1:    # in-kernel tail mask
                    chunk = jnp.where(lane < rem_lanes, chunk, -jnp.inf)
                better = chunk > run_max              # strict '>' == first ties
                run_max = jnp.where(better, chunk, run_max)
                run_idx = jnp.where(better, chunk_base + j, run_idx)   # splat
            max_sc[pl.ds(r0, tsr), :] = run_max
            idx_sc[pl.ds(r0, tsr), :] = run_idx
            return carry

        jax.lax.fori_loop(0, n_sub, sub_body, 0)

    if n_voc_tiles > 1:
        @pl.when(v < last)
        def _fast():                                  # untouched fast path
            tile_pass(v * n_chunks, n_chunks, 0)

    @pl.when(v == last)
    def _tail_and_finalize():
        tile_pass(last * n_chunks, tail_full, tail_rem)
        # Finalize per row sub-block: one cross-lane (XLU) reduce each, static
        # lane offsets into the lane-dense (1, tr) output block.
        for si in range(n_sub):
            r0 = si * tsr
            run_max = max_sc[r0:r0 + tsr, :]
            run_idx = idx_sc[r0:r0 + tsr, :]
            idx_abs = run_idx * _LANE + lane
            row_max = jnp.max(run_max, axis=1, keepdims=True)
            cand = jnp.where(run_max == row_max, idx_abs, _INT32_MAX)
            best = jnp.min(cand, axis=1).astype(jnp.int32)   # min idx on ties
            out_ref[:, r0:r0 + tsr] = best[None, :]


def _choose_tiles(rows, vocab, itemsize):
    tv = min(_round_up(vocab, _LANE), 30 * _LANE)     # up to 3840 lanes / tile
    tr = 512 if rows >= 512 else _round_up(max(rows, _SUBLANE), _SUBLANE)
    # Keep the double-buffered input block inside every generation's scoped
    # VMEM budget (v7x: 64 MiB physical / 32 MiB default scoped).
    while tr > _SUBLANE and 2 * tr * tv * itemsize > (16 << 20):
        tr = max(_SUBLANE, _round_up(tr // 2, _SUBLANE))
    return tr, tv


def _vmem_limit_bytes(tr, tv, itemsize):
    needed = (3 * tr * tv * itemsize        # double-buffered input + slack
              + tr * _LANE * 8              # (tr,128) f32 + i32 running scratch
              + 2 * tr * 4                  # resident output block
              + (4 << 20))                  # headroom
    try:
        cap = int(pltpu.get_tpu_info().vmem_capacity_bytes)
    except Exception:
        cap = 64 << 20                      # assume smallest generation (v7x)
    return int(min(max(needed, 16 << 20), (cap * 45) // 100))


@functools.partial(jax.jit, static_argnames=("tr", "tv", "tsr"))
def emission_to_ids(emission, *, tr=None, tv=None, tsr=None):
    """Predicted token ids = argmax over the vocab axis, via a Pallas TPU kernel."""
    B, S, V = emission.shape
    rows = B * S
    itemsize = jnp.dtype(emission.dtype).itemsize
    dtr, dtv = _choose_tiles(rows, V, itemsize)
    tr = dtr if tr is None else tr
    tv = dtv if tv is None else tv
    if tsr is None:
        tsr = 32 if tr % 32 == 0 else (16 if tr % 16 == 0 else _SUBLANE)
    assert tr % _SUBLANE == 0 and tv % _LANE == 0 and tr % tsr == 0

    x = emission.reshape(rows, V)           # no padding: tails masked in-kernel
    n_row_tiles = pl.cdiv(rows, tr)
    n_voc_tiles = pl.cdiv(V, tv)

    grid_spec = pltpu.PrefetchScalarGridSpec(
        num_scalar_prefetch=0,
        grid=(n_row_tiles, n_voc_tiles),    # reduction (vocab) axis last
        in_specs=[pl.BlockSpec((tr, tv), lambda r, v: (r, v))],
        out_specs=pl.BlockSpec((1, tr), lambda r, v: (r, 0)),
        scratch_shapes=[
            pltpu.VMEM((tr, _LANE), jnp.float32),
            pltpu.VMEM((tr, _LANE), jnp.int32),
        ],
    )
    out = pl.pallas_call(
        functools.partial(_argmax_kernel, vocab=V, tsr=tsr),
        out_shape=jax.ShapeDtypeStruct((n_row_tiles, tr), jnp.int32),
        grid_spec=grid_spec,
        compiler_params=pltpu.CompilerParams(
            dimension_semantics=("parallel", "arbitrary"),
            vmem_limit_bytes=_vmem_limit_bytes(tr, tv, itemsize),
        ),
    )(x)
    return out.reshape(n_row_tiles * tr)[:rows].reshape(B, S)


# ----------------------------------------------------------------------------
# Tokenizer module equivalent.
# ----------------------------------------------------------------------------
class Tokenizer:
    """JAX/Pallas analogue of the PyTorch Tokenizer module.

    A deterministic in-script vocabulary stands in for
    BertTokenizer.from_pretrained('bert-base-uncased') (no file / network I/O).
    """

    def __init__(self):
        base_tokens = (
            ["[PAD]", "[UNK]", "[CLS]", "[SEP]", "[MASK]"]
            + [f"tok{i}" for i in range(123)]   # 128 entries total
        )
        self._id_to_tok = {i: t for i, t in enumerate(base_tokens)}
        self._tok_to_id = {t: i for i, t in enumerate(base_tokens)}
        self._unk_id = self._tok_to_id["[UNK]"]

    # forward(emission) -> str : matches the reference semantics exactly
    # (consumes the tensor, returns the empty string).
    def forward(self, emission: jnp.ndarray) -> str:
        _ = jax.block_until_ready(emission_to_ids(emission))
        return ''

    def __call__(self, emission: jnp.ndarray) -> str:
        return self.forward(emission)

    # --- string-side helpers ---
    # TODO(synk): BertTokenizer's WordPiece algorithm is pure string processing
    # with no TPU/Pallas equivalent; a deterministic toy vocab is used instead.
    def convert_tokens_to_ids(self, text):
        if isinstance(text, str):
            return self._tok_to_id.get(text, self._unk_id)
        return [self._tok_to_id.get(t, self._unk_id) for t in text]

    def convert_ids_to_tokens(self, predicted_arr):
        return [self._id_to_tok.get(int(i), "[UNK]") for i in predicted_arr]

    def tokenize(self, tokenize_input: str):
        return [t if t in self._tok_to_id else "[UNK]"
                for t in tokenize_input.lower().split()]


if __name__ == "__main__":
    key = jax.random.PRNGKey(0)
    k1, k2, k3, k4, k5 = jax.random.split(key, 5)

    # Test 1: small shape matching the toy vocab (single block, default tiles).
    B, S, V = 2, 8, 128
    emission = jax.random.normal(k1, (B, S, V), dtype=jnp.float32)
    ids = jax.block_until_ready(emission_to_ids(emission))
    ref = jnp.argmax(emission, axis=-1).astype(jnp.int32)
    assert ids.shape == (B, S) and ids.dtype == jnp.int32
    assert bool(jnp.all(ids == ref))

    # Test 2: multi-tile vocab grid + in-kernel tail masking + ties
    # (all-negative, integer-valued logits expose masking or tie-break bugs).
    B2, S2, V2 = 2, 16, 300
    em2 = jax.random.randint(k2, (B2, S2, V2), -7, 0).astype(jnp.float32)
    ids2 = jax.block_until_ready(emission_to_ids(em2, tr=8, tv=128))
    ref2 = jnp.argmax(em2, axis=-1).astype(jnp.int32)
    assert bool(jnp.all(ids2 == ref2))

    # Test 3: bf16 logits kept bf16 through the DMA, upcast in-kernel.
    em3 = jax.random.normal(k3, (2, 16, 384), dtype=jnp.float32).astype(jnp.bfloat16)
    ids3 = jax.block_until_ready(emission_to_ids(em3, tr=16, tv=128))
    ref3 = jnp.argmax(em3.astype(jnp.float32), axis=-1).astype(jnp.int32)
    assert bool(jnp.all(ids3 == ref3))

    # Test 4: default tile path with multiple row sub-blocks (fori_loop) and a
    # partial tail chunk (V=1000 -> rem=104).
    em4 = jax.random.normal(k4, (4, 128, 1000), dtype=jnp.float32)
    ids4 = jax.block_until_ready(emission_to_ids(em4))
    ref4 = jnp.argmax(em4, axis=-1).astype(jnp.int32)
    assert bool(jnp.all(ids4 == ref4))

    # Test 5: rows not a multiple of the row tile + multiple vocab tiles
    # (tail row tile sliced off in the wrapper, tail vocab tile masked).
    em5 = jax.random.normal(k5, (2, 100, 3000), dtype=jnp.float32)
    ids5 = jax.block_until_ready(emission_to_ids(em5, tr=64, tv=1024))
    ref5 = jnp.argmax(em5, axis=-1).astype(jnp.int32)
    assert bool(jnp.all(ids5 == ref5))

    # Module forward semantics (returns '') + string helpers.
    tok = Tokenizer()
    out = tok.forward(emission)
    assert out == ''
    tokens = tok.convert_ids_to_tokens(list(map(int, ids[0])))
    _ = tok.convert_tokens_to_ids(tokens)
    _ = tok.tokenize("tok1 tok2 hello")

    print("KERNEL_OK")
</pallas_src>

<mosaic_0001>
module attributes {stable_mosaic.version = 11 : i64} {
  func.func @_argmax_kernel(%arg0: i32, %arg1: i32, %arg2: memref<16x128xf32, #tpu.memory_space<vmem>>, %arg3: memref<1x16xi32, #tpu.memory_space<vmem>>, %arg4: memref<16x128xf32, #tpu.memory_space<vmem>>, %arg5: memref<16x128xi32, #tpu.memory_space<vmem>>) attributes {dimension_semantics = [#tpu.dimension_semantics<parallel>, #tpu.dimension_semantics<arbitrary>], iteration_bounds = array<i64: 1, 1>, scalar_prefetch = 0 : i64, scratch_operands = 2 : i64, tpu.core_type = #tpu.core_type<tc>, window_params = [{transform_indices = @transform_0, window_bounds = array<i64: 16, 128>}, {transform_indices = @transform_1, window_bounds = array<i64: 1, 16>}]} {
    %c0_i32 = arith.constant 0 : i32
    %0 = arith.cmpi eq, %arg1, %c0_i32 : i32
    %1 = arith.extui %0 : i1 to i32
    %c0_i32_0 = arith.constant 0 : i32
    %2 = arith.cmpi ne, %1, %c0_i32_0 : i32
    scf.if %2 {
      %cst = arith.constant 0xFF800000 : f32
      %7 = vector.broadcast %cst : f32 to vector<16x128xf32>
      %c0 = arith.constant 0 : index
      %c0_3 = arith.constant 0 : index
      %8 = vector.load %arg4[%c0, %c0_3] : memref<16x128xf32, #tpu.memory_space<vmem>>, vector<16x128xf32>
      tpu.vector_store %arg4[%c0, %c0_3], %7 {strides = array<i32>} : memref<16x128xf32, #tpu.memory_space<vmem>>, vector<16x128xf32>,
      %c0_i32_4 = arith.constant 0 : i32
      %9 = vector.broadcast %c0_i32_4 : i32 to vector<16x128xi32>
      %c0_5 = arith.constant 0 : index
      %c0_6 = arith.constant 0 : index
      %10 = vector.load %arg5[%c0_5, %c0_6] : memref<16x128xi32, #tpu.memory_space<vmem>>, vector<16x128xi32>
      tpu.vector_store %arg5[%c0_5, %c0_6], %9 {strides = array<i32>} : memref<16x128xi32, #tpu.memory_space<vmem>>, vector<16x128xi32>,
    } else {
    }
    %3 = tpu.iota {dimensions = array<i32: 1>} : vector<16x128xi32>
    %c0_i32_1 = arith.constant 0 : i32
    %4 = arith.cmpi eq, %arg1, %c0_i32_1 : i32
    %5 = arith.extui %4 : i1 to i32
    %c0_i32_2 = arith.constant 0 : i32
    %6 = arith.cmpi ne, %5, %c0_i32_2 : i32
    scf.if %6 {
      %c0_i32_3 = arith.constant 0 : i32
      %c16_i32 = arith.constant 16 : i32
      %7 = arith.muli %c0_i32_3, %c16_i32 : i32
      %8 = tpu.assume_multiple %7, 16 : i32
      %9 = arith.index_cast %8 : i32 to index
      %c0 = arith.constant 0 : index
      %10 = vector.load %arg4[%9, %c0] : memref<16x128xf32, #tpu.memory_space<vmem>>, vector<16x128xf32>
      %11 = arith.index_cast %8 : i32 to index
      %c0_4 = arith.constant 0 : index
      %12 = vector.load %arg5[%11, %c0_4] : memref<16x128xi32, #tpu.memory_space<vmem>>, vector<16x128xi32>
      %13 = arith.index_cast %8 : i32 to index
      %c0_5 = arith.constant 0 : index
      %14 = vector.load %arg2[%13, %c0_5] : memref<16x128xf32, #tpu.memory_space<vmem>>, vector<16x128xf32>
      %15 = arith.cmpf ogt, %14, %10 : vector<16x128xf32>
      %16 = arith.select %15, %14, %10 : vector<16x128xi1>, vector<16x128xf32>
      %c0_i32_6 = arith.constant 0 : i32
      %17 = vector.broadcast %c0_i32_6 : i32 to vector<16x128xi32>
      %18 = arith.select %15, %17, %12 : vector<16x128xi1>, vector<16x128xi32>
      %19 = arith.index_cast %8 : i32 to index
      %c0_7 = arith.constant 0 : index
      %20 = vector.load %arg4[%19, %c0_7] : memref<16x128xf32, #tpu.memory_space<vmem>>, vector<16x128xf32>
      tpu.vector_store %arg4[%19, %c0_7], %16 {strides = array<i32>} : memref<16x128xf32, #tpu.memory_space<vmem>>, vector<16x128xf32>,
      %21 = arith.index_cast %8 : i32 to index
      %c0_8 = arith.constant 0 : index
      %22 = vector.load %arg5[%21, %c0_8] : memref<16x128xi32, #tpu.memory_space<vmem>>, vector<16x128xi32>
      tpu.vector_store %arg5[%21, %c0_8], %18 {strides = array<i32>} : memref<16x128xi32, #tpu.memory_space<vmem>>, vector<16x128xi32>,
      %c1_i32 = arith.constant 1 : i32
      %c0_9 = arith.constant 0 : index
      %c0_10 = arith.constant 0 : index
      %23 = vector.load %arg4[%c0_9, %c0_10] : memref<16x128xf32, #tpu.memory_space<vmem>>, vector<16x128xf32>
      %c0_11 = arith.constant 0 : index
      %c0_12 = arith.constant 0 : index
      %24 = vector.load %arg5[%c0_11, %c0_12] : memref<16x128xi32, #tpu.memory_space<vmem>>, vector<16x128xi32>
      %c128_i32 = arith.constant 128 : i32
      %25 = vector.broadcast %c128_i32 : i32 to vector<16x128xi32>
      %26 = arith.muli %24, %25 : vector<16x128xi32>
      %27 = arith.addi %26, %3 : vector<16x128xi32>
      %cst = arith.constant dense<0xFF800000> : vector<16xf32>
      %28 = vector.multi_reduction <maximumf>, %23, %cst [1] : vector<16x128xf32> to vector<16xf32>
      %29 = vector.shape_cast %28 : vector<16xf32> to vector<16x1xf32>
      %30 = vector.broadcast %29 : vector<16x1xf32> to vector<16x128xf32>
      %31 = arith.cmpf oeq, %23, %30 : vector<16x128xf32>
      %c2147483647_i32 = arith.constant 2147483647 : i32
      %32 = vector.broadcast %c2147483647_i32 : i32 to vector<16x128xi32>
      %33 = arith.select %31, %27, %32 : vector<16x128xi1>, vector<16x128xi32>
      %cst_13 = arith.constant dense<2147483647> : vector<16xi32>
      %34 = vector.multi_reduction <minsi>, %33, %cst_13 [1] : vector<16x128xi32> to vector<16xi32>
      %35 = vector.shape_cast %34 : vector<16xi32> to vector<1x16xi32>
      %c0_14 = arith.constant 0 : index
      %c0_15 = arith.constant 0 : index
      %36 = vector.load %arg3[%c0_14, %c0_15] : memref<1x16xi32, #tpu.memory_space<vmem>>, vector<1x16xi32>
      tpu.vector_store %arg3[%c0_14, %c0_15], %35 {strides = array<i32>} : memref<1x16xi32, #tpu.memory_space<vmem>>, vector<1x16xi32>,
    } else {
    }
    return
  }
  func.func @transform_0(%arg0: i32, %arg1: i32) -> (i32, i32) {
    %c0_i32 = arith.constant 0 : i32
    return %arg0, %arg1 : i32, i32
  }
  func.func @transform_1(%arg0: i32, %arg1: i32) -> (i32, i32) {
    %c0_i32 = arith.constant 0 : i32
    %c0_i32_0 = arith.constant 0 : i32
    return %arg0, %c0_i32 : i32, i32
  }
}

</mosaic_0001>

<llo_original>
// kernel: emission_to_ids.1
$region0: #{emission_to_ids.1}
  #allocation0 [shape = 'u32[]', space=smem, size = 0x4, offset = 0x4, fixed_abs, tag = 'smem constant byte address 0x4 - core index']
  #allocation1 [shape = 'u32[144,128]{1,0:T(1,128)}', space=vmem, size = 0x12000, scoped, tag = 'internal scratch']
  #allocation2 [shape = 'f32[16,128]{1,0:T(8,128)}', space=vmem, size = 0x2000, scoped, tag = 'scratch operand']
  #allocation3 [shape = 's32[16,128]{1,0:T(8,128)}', space=vmem, size = 0x2000, scoped, tag = 'scratch operand']
  %s0 = inlined_call_operand.hbm [shape: f32[16,128], index: 0, kind: input, shape index: {}]
  %s1 = inlined_call_operand.vmem [shape: s32[1,16], index: 1, kind: output, shape index: {}]
  %s2 = sld [smem:[#allocation0]]
  $region26: #{emission_to_ids.1} parent=0
    _
  %s4 = ssub.s32 1, %s2
  %s5 = scalar_select 0, %s4, %s2
  $region1: #{emission_to_ids.1} parent=0
    #allocation4 [shape = 'u8[8192]{0}', space=vmem, size = 0x2000, scoped, tag = 'input window, operand 0, single buffered']
    #allocation5 [shape = 's32[1]{0}', space=sflag, size = 0x4, scoped, tag = 'scoped memory for emission_to_ids.1']
    %6 = vsyncpa [#allocation5], 0
    // Predicated region
    $region2: #{emission_to_ids.1} parent=1 // pred_check
      _
    $region3: #{emission_to_ids.1} parent=1 // pred_check_branch
      %8 = sbr.rel (0) target = $region5
    $region4: #{emission_to_ids.1} parent=1 // pred_region
      %s10 = ssub.s32 256, 256
      %11 = vsyncadd [#allocation5], %s10
      %s12 = sshll.u32 [#allocation4], 4
      %s13 = int_to_ptr.vmem [resolvable:$true] %s12
      %18 = dma.hbm_to_vmem [thread:$0]  %s0, 256, %s13, [#allocation5], 128, 128, 8
    $region5: #{emission_to_ids.1} parent=1 // pred_fallthru
      _
    // Predicated region
    $region6: #{emission_to_ids.1} parent=1 // pred_check
      _
    $region7: #{emission_to_ids.1} parent=1 // pred_check_branch
      %20 = sbr.rel (0) target = $region9
    $region8: #{emission_to_ids.1} parent=1 // pred_region
      %21 = dma.done [#allocation5], 256
    $region9: #{emission_to_ids.1} parent=1 // pred_fallthru
      _
    %p22 = scmp.eq.s32.totalorder 0, 0
    // Predicated region
    $region10: #{emission_to_ids.1} parent=1 // pred_check
      %p23 = pneg %p22
    $region11: #{emission_to_ids.1} parent=1 // pred_check_branch
      %25 = sbr.rel (%p23) target = $region13
    $region12: #{emission_to_ids.1} parent=1 // pred_region
      %26 = vst [vmem:[#allocation2] sm:$0xff] -inf
      %27 = vst [vmem:[#allocation2 + $0x8] sm:$0xff] -inf
      %28 = vst [vmem:[#allocation3] sm:$0xff] 0
      %29 = vst [vmem:[#allocation3 + $0x8] sm:$0xff] 0
    $region13: #{emission_to_ids.1} parent=1 // pred_fallthru
      _
    %v30 = vlaneseq
    %v31 = vand.u32 %v30, 127
    // Predicated region
    $region14: #{emission_to_ids.1} parent=1 // pred_check
      %p32 = pneg %p22
    $region15: #{emission_to_ids.1} parent=1 // pred_check_branch
      %34 = sbr.rel (%p32) target = $region17
    $region16: #{emission_to_ids.1} parent=1 // pred_region
      %v35 = vld [vmem:[#allocation2] sm:$0xff]
      %v36 = vld [vmem:[#allocation2 + $0x8] sm:$0xff]
      %v37 = vld [vmem:[#allocation3] sm:$0xff]
      %v38 = vld [vmem:[#allocation3 + $0x8] sm:$0xff]
      %v39 = vld [vmem:[#allocation4] sm:$0xff]
      %v40 = vld [vmem:[#allocation4 + $0x8] sm:$0xff]
      %vm41 = vcmp.gt.f32.partialorder %v39, %v35
      %vm42 = vcmp.gt.f32.partialorder %v40, %v36
      %v43 = vsel %vm41, %v39, %v35
      %v44 = vsel %vm42, %v40, %v36
      %v45 = vsel %vm41, 0, %v37
      %v46 = vsel %vm42, 0, %v38
      %47 = vst [vmem:[#allocation2] sm:$0xff] %v43
      %48 = vst [vmem:[#allocation2 + $0x8] sm:$0xff] %v44
      %49 = vst [vmem:[#allocation3] sm:$0xff] %v45
      %50 = vst [vmem:[#allocation3 + $0x8] sm:$0xff] %v46
      %v51 = vld [vmem:[#allocation2] sm:$0xff]
      %v52 = vld [vmem:[#allocation2 + $0x8] sm:$0xff]
      %v53 = vld [vmem:[#allocation3] sm:$0xff]
      %v54 = vld [vmem:[#allocation3 + $0x8] sm:$0xff]
      %v55 = vmul.u32 %v53, 128
      %v56 = vmul.u32 %v54, 128
      %v57 = vadd.s32 %v55, %v31
      %v58 = vadd.s32 %v56, %v31
      %59 = vmax.xlane.f32.xlu0 %v51
      %v60 = vpop.xlane.xlu0 %59
      %61 = vmax.xlane.f32.xlu0 %v52
      %v62 = vpop.xlane.xlu0 %61
      %vm63 = vcmp.eq.f32.partialorder %v51, %v60
      %vm64 = vcmp.eq.f32.partialorder %v52, %v62
      %v65 = vsel %vm63, %v57, 2147483647
      %v66 = vsel %vm64, %v58, 2147483647
      %v67 = vand.u32 %v65, 65535
      %v68 = vshra.s32 %v65, 16
      %v69 = vcvt.s32.f32 %v67
      %v70 = vcvt.s32.f32 %v68
      %71 = vmin.xlane.f32.xlu0 %v70
      %v72 = vpop.xlane.xlu0 %71
      %vm73 = vcmp.eq.f32.partialorder %v70, %v72
      %v74 = vsel %vm73, %v69, inf
      %75 = vmin.xlane.f32.xlu0 %v74
      %v76 = vpop.xlane.xlu0 %75
      %v77 = vcvt.f32.s32 %v76
      %v78 = vcvt.f32.s32 %v72
      %v79 = vshll.u32 %v78, 16
      %v80 = vadd.s32 %v79, %v77
      %v81 = vand.u32 %v66, 65535
      %v82 = vshra.s32 %v66, 16
      %v83 = vcvt.s32.f32 %v81
      %v84 = vcvt.s32.f32 %v82
      %85 = vmin.xlane.f32.xlu0 %v84
      %v86 = vpop.xlane.xlu0 %85
      %vm87 = vcmp.eq.f32.partialorder %v84, %v86
      %v88 = vsel %vm87, %v83, inf
      %89 = vmin.xlane.f32.xlu0 %v88
      %v90 = vpop.xlane.xlu0 %89
      %v91 = vcvt.f32.s32 %v90
      %v92 = vcvt.f32.s32 %v86
      %v93 = vshll.u32 %v92, 16
      %v94 = vadd.s32 %v93, %v91
      %v95 = vlaneseq
      %v96 = vshrl.u32 %v95, 7
      %v97 = vsub.s32 %v31, %v96
      %v98 = vrot.slane %v80, %v97
      %v99 = vadd.s32 %v31, 4294967288
      %v100 = vlaneseq
      %v101 = vshrl.u32 %v100, 7
      %v102 = vsub.s32 %v99, %v101
      %v103 = vrot.slane %v94, %v102
      %vm104 = vcmask 130112
      %v105 = vsel %vm104, %v103, %v98
      %vm106 = vcmask 122880
      %107 = vst.msk [vmem:[%s1] sm:$0x1] %vm106, %v105
    $region17: #{emission_to_ids.1} parent=1 // pred_fallthru
      _
    // Predicated region
    $region18: #{emission_to_ids.1} parent=1 // pred_check
      _
    $region19: #{emission_to_ids.1} parent=1 // pred_check_branch
      %109 = sbr.rel (0) target = $region21
    $region20: #{emission_to_ids.1} parent=1 // pred_region
      _
    $region21: #{emission_to_ids.1} parent=1 // pred_fallthru
      _
    // Predicated region
    $region22: #{emission_to_ids.1} parent=1 // pred_check
      _
    $region23: #{emission_to_ids.1} parent=1 // pred_check_branch
      %111 = sbr.rel (0) target = $region25
    $region24: #{emission_to_ids.1} parent=1 // pred_region
      _
    $region25: #{emission_to_ids.1} parent=1 // pred_fallthru
      _
    %112 = vsyncpa [#allocation5], 1

</llo_original>
